<compile_context>
chip_gen: v6e
topology: v6e:2x2x1
jax: 0.10.0
libtpu: 0.0.40
codegen_flags: <defaults>
</compile_context>

<pallas_src>
import numpy as np
import jax
import jax.numpy as jnp
from jax.experimental import pallas as pl
from jax.experimental.pallas import tpu as pltpu

# ImageNet normalization constants (torchvision defaults)
IMAGENET_MEAN = np.array([0.485, 0.456, 0.406], dtype=np.float32)
IMAGENET_STD = np.array([0.229, 0.224, 0.225], dtype=np.float32)

_BF16_SUBLANE = 16                      # bf16 sublane tile
_MAX_IMAGES_PER_STEP = 8
_DEFAULT_VMEM_CAP = 64 * 1024 * 1024    # conservative fallback (v7x per-core VMEM)


def _bilinear_matrix(out_size: int, in_size: int) -> np.ndarray:
    """Row-stochastic bilinear interpolation matrix (align_corners=False)."""
    i = np.arange(out_size, dtype=np.float64)
    src = (i + 0.5) * (in_size / out_size) - 0.5
    i0 = np.floor(src).astype(np.int64)
    frac = src - i0
    i0c = np.clip(i0, 0, in_size - 1)
    i1c = np.clip(i0 + 1, 0, in_size - 1)
    w = np.zeros((out_size, in_size), dtype=np.float32)
    np.add.at(w, (np.arange(out_size), i0c), (1.0 - frac).astype(np.float32))
    np.add.at(w, (np.arange(out_size), i1c), frac.astype(np.float32))
    return w


def _cropped_resize_matrix(in_size: int, resize_size: int, crop_size: int) -> np.ndarray:
    """Bilinear resize matrix with center crop folded in: (crop, in_size)."""
    w = _bilinear_matrix(resize_size, in_size)
    off = (resize_size - crop_size) // 2
    return w[off:off + crop_size, :]


def _vmem_capacity_bytes() -> int:
    try:
        return int(pltpu.get_tpu_info().vmem_capacity_bytes)
    except Exception:
        return _DEFAULT_VMEM_CAP


def _per_step_vmem_bytes(nb, c, h, w, hc, wc, out_bytes) -> int:
    """Conservative per-grid-step VMEM estimate (double-buffered blocks + temps)."""
    in_blk = nb * c * h * w                         # uint8 input block
    out_blk = nb * c * hc * wc * out_bytes          # output block
    weights = (hc * h + w * wc) * 2                 # bf16 Wh + Ww^T
    # in-kernel temporaries (worst case = merged W-first path): f32 + bf16
    # copies of x, f32 + bf16 copies of the W-resized intermediate, one f32
    # output plane before the store.
    temps = nb * c * h * w * 6 + nb * c * h * wc * 6 + hc * wc * 4
    return 2 * in_blk + 2 * out_blk + 2 * weights + temps + (1 << 20)


def _pick_images_per_step(n, c, h, w, hc, wc, out_bytes, budget) -> int:
    """Largest divisor of n (<= _MAX_IMAGES_PER_STEP) whose step fits the budget."""
    nb = 1
    for cand in range(2, min(n, _MAX_IMAGES_PER_STEP) + 1):
        if n % cand == 0 and _per_step_vmem_bytes(cand, c, h, w, hc, wc, out_bytes) <= budget:
            nb = cand
    return nb


def _make_preprocess_kernel(w_first: bool, merge_first: bool):
    def kernel(scale_ref, bias_ref, wh_ref, wwt_ref, x_ref, o_ref):
        nb, c, hin, win = x_ref.shape
        wc = wwt_ref.shape[1]
        wh = wh_ref[...]          # (Hc, Hin)  bf16
        wwt = wwt_ref[...]        # (Win, Wc)  bf16

        def to_bf16(v):
            # uint8 -> f32 -> bf16 (pixel values 0..255 are exact in bf16; the
            # cast goes via f32 because a direct u8->bf16 convert may not lower
            # on all Mosaic versions).
            return v.astype(jnp.float32).astype(jnp.bfloat16)

        def store(n_i, c_i, z_f32):
            # fused /255 + normalize epilogue: out = z * 1/(255*std) - mean/std
            o_ref[n_i, c_i, :, :] = (z_f32 * scale_ref[c_i]
                                     - bias_ref[c_i]).astype(o_ref.dtype)

        if w_first and merge_first:
            # W-resize for every plane in one big MXU matmul; the reshape is a
            # free layout no-op because Hin % 16 == 0 (bf16 sublane tile).
            x = to_bf16(x_ref[...])                                    # (Nb,C,Hin,Win)
            y = jnp.dot(x.reshape(nb * c * hin, win), wwt,
                        preferred_element_type=jnp.float32)
            y = y.astype(jnp.bfloat16).reshape(nb, c, hin, wc)
            for n_i in range(nb):
                for c_i in range(c):
                    z = jnp.dot(wh, y[n_i, c_i],
                                preferred_element_type=jnp.float32)    # (Hc, Wc)
                    store(n_i, c_i, z)
        elif w_first:
            # Hin not sublane-aligned: merging planes would force a VMEM
            # relayout, so do per-plane matmuls instead.
            for n_i in range(nb):
                for c_i in range(c):
                    xp = to_bf16(x_ref[n_i, c_i])                      # (Hin, Win)
                    y = jnp.dot(xp, wwt, preferred_element_type=jnp.float32)
                    z = jnp.dot(wh, y.astype(jnp.bfloat16),
                                preferred_element_type=jnp.float32)
                    store(n_i, c_i, z)
        else:
            # Portrait (Win < Hin): H-resize first so the smaller source dim
            # survives into the second matmul (fewer MXU FLOPs).
            for n_i in range(nb):
                for c_i in range(c):
                    xp = to_bf16(x_ref[n_i, c_i])                      # (Hin, Win)
                    t = jnp.dot(wh, xp, preferred_element_type=jnp.float32)
                    z = jnp.dot(t.astype(jnp.bfloat16), wwt,
                                preferred_element_type=jnp.float32)
                    store(n_i, c_i, z)

    return kernel


def imagenet_preprocess(x: jax.Array,
                        resize_size: int,
                        crop_size: int,
                        out_dtype=jnp.float32) -> jax.Array:
    """x: (N, C, H, W) uint8 pixel values in [0, 255]."""
    n, c, h, w = x.shape
    assert c == 3, "ImageNet preprocess expects 3-channel RGB input"
    assert x.dtype == jnp.uint8, "expects uint8 pixel input"

    hc = wc = crop_size
    out_bytes = jnp.dtype(out_dtype).itemsize

    # Resize+crop matrices as bf16 MXU operands (pixels 0..255 stay exact).
    wh = jnp.asarray(_cropped_resize_matrix(h, resize_size, crop_size),
                     dtype=jnp.bfloat16)                                  # (Hc, Hin)
    wwt = jnp.asarray(_cropped_resize_matrix(w, resize_size, crop_size).T,
                      dtype=jnp.bfloat16)                                 # (Win, Wc)
    scale = jnp.asarray(1.0 / (255.0 * IMAGENET_STD), dtype=jnp.float32)  # (C,)
    bias = jnp.asarray(IMAGENET_MEAN / IMAGENET_STD, dtype=jnp.float32)   # (C,)

    w_first = h <= w                                  # landscape / square
    merge_first = w_first and (h % _BF16_SUBLANE == 0)

    vmem_cap = _vmem_capacity_bytes()
    nb = _pick_images_per_step(n, c, h, w, hc, wc, out_bytes, vmem_cap // 2)
    per_step = _per_step_vmem_bytes(nb, c, h, w, hc, wc, out_bytes)
    vmem_limit = int(min(vmem_cap * 3 // 4, max(per_step * 5 // 4, 16 << 20)))

    if w_first:
        flops = 2 * n * c * (h * w * wc + hc * h * wc)
    else:
        flops = 2 * n * c * (hc * h * w + hc * w * wc)
    bytes_accessed = (n * c * h * w + n * c * hc * wc * out_bytes
                      + (hc * h + w * wc) * 2 + 2 * c * 4)

    kernel = _make_preprocess_kernel(w_first, merge_first)

    return pl.pallas_call(
        kernel,
        out_shape=jax.ShapeDtypeStruct((n, c, hc, wc), out_dtype),
        grid=(n // nb,),
        in_specs=[
            # per-channel scale / bias live in SMEM (scalar-indexed in kernel)
            pl.BlockSpec(memory_space=pltpu.MemorySpace.SMEM),
            pl.BlockSpec(memory_space=pltpu.MemorySpace.SMEM),
            # small interpolation matrices: full arrays, resident every step
            pl.BlockSpec((hc, h), lambda i: (0, 0)),
            pl.BlockSpec((w, wc), lambda i: (0, 0)),
            # Nb uint8 images per grid step
            pl.BlockSpec((nb, c, h, w), lambda i: (i, 0, 0, 0)),
        ],
        out_specs=pl.BlockSpec((nb, c, hc, wc), lambda i: (i, 0, 0, 0)),
        compiler_params=pltpu.CompilerParams(
            dimension_semantics=("parallel",),
            vmem_limit_bytes=vmem_limit),
        cost_estimate=pl.CostEstimate(flops=flops, transcendentals=0,
                                      bytes_accessed=bytes_accessed),
    )(scale, bias, wh, wwt, x)


def _reference(x, resize_size, crop_size):
    """Pure-JAX f32 reference for a sanity check."""
    n, c, h, w = x.shape
    wh = jnp.asarray(_cropped_resize_matrix(h, resize_size, crop_size))
    ww = jnp.asarray(_cropped_resize_matrix(w, resize_size, crop_size))
    xf = x.astype(jnp.float32)
    y = jnp.einsum('ah,nchw,bw->ncab', wh, xf, ww)
    y = y / 255.0
    mean = jnp.asarray(IMAGENET_MEAN).reshape(1, 3, 1, 1)
    std = jnp.asarray(IMAGENET_STD).reshape(1, 3, 1, 1)
    return (y - mean) / std


if __name__ == "__main__":
    key = jax.random.PRNGKey(0)
    N, C = 2, 3
    RESIZE, CROP = 12, 8

    # Exercise all three trace-time code paths:
    #   (16,16) square   -> merged W-first matmul
    #   (24,16) portrait -> H-resize first
    #   (12,24) landscape, Hin not sublane-aligned -> per-plane W-first
    for idx, (H, W) in enumerate([(16, 16), (24, 16), (12, 24)]):
        k = jax.random.fold_in(key, idx)
        x = jax.random.randint(k, (N, C, H, W), 0, 256,
                               dtype=jnp.int32).astype(jnp.uint8)
        out = jax.block_until_ready(imagenet_preprocess(x, RESIZE, CROP))
        ref = _reference(x, RESIZE, CROP)
        assert out.shape == (N, C, CROP, CROP)
        # bf16 matmul operands -> loosened tolerance vs the f32 reference
        # (worst-case error < ~0.03 on the normalized output scale).
        assert jnp.allclose(out, ref, atol=6e-2), \
            float(jnp.max(jnp.abs(out - ref)))

    print("KERNEL_OK")
</pallas_src>

<mosaic_0001>
module attributes {stable_mosaic.version = 11 : i64} {
  func.func @kernel(%arg0: i32, %arg1: memref<3xf32, #tpu.memory_space<smem>>, %arg2: memref<3xf32, #tpu.memory_space<smem>>, %arg3: memref<8x16xbf16, #tpu.memory_space<vmem>>, %arg4: memref<16x8xbf16, #tpu.memory_space<vmem>>, %arg5: memref<2x3x16x16xi8, #tpu.memory_space<vmem>>, %arg6: memref<2x3x8x8xf32, #tpu.memory_space<vmem>>) attributes {dimension_semantics = [#tpu.dimension_semantics<parallel>], iteration_bounds = array<i64: 1>, scalar_prefetch = 0 : i64, scratch_operands = 0 : i64, tpu.core_type = #tpu.core_type<tc>, window_params = [{transform_indices = @transform_0, window_bounds = array<i64: 3>}, {transform_indices = @transform_1, window_bounds = array<i64: 3>}, {pipeline_mode = #tpu.pipeline_mode<synchronous>, transform_indices = @transform_2, window_bounds = array<i64: 8, 16>}, {pipeline_mode = #tpu.pipeline_mode<synchronous>, transform_indices = @transform_3, window_bounds = array<i64: 16, 8>}, {transform_indices = @transform_4, window_bounds = array<i64: 2, 3, 16, 16>}, {transform_indices = @transform_5, window_bounds = array<i64: 2, 3, 8, 8>}]} {
    %c0 = arith.constant 0 : index
    %c0_0 = arith.constant 0 : index
    %0 = vector.load %arg3[%c0, %c0_0] : memref<8x16xbf16, #tpu.memory_space<vmem>>, vector<8x16xbf16>
    %c0_1 = arith.constant 0 : index
    %c0_2 = arith.constant 0 : index
    %1 = vector.load %arg4[%c0_1, %c0_2] : memref<16x8xbf16, #tpu.memory_space<vmem>>, vector<16x8xbf16>
    %c0_3 = arith.constant 0 : index
    %c0_4 = arith.constant 0 : index
    %c0_5 = arith.constant 0 : index
    %c0_6 = arith.constant 0 : index
    %2 = vector.load %arg5[%c0_3, %c0_4, %c0_5, %c0_6] : memref<2x3x16x16xi8, #tpu.memory_space<vmem>>, vector<2x3x16x16xi8>
    %3 = arith.uitofp %2 : vector<2x3x16x16xi8> to vector<2x3x16x16xf32>
    %4 = arith.truncf %3 : vector<2x3x16x16xf32> to vector<2x3x16x16xbf16>
    %5 = vector.shape_cast %4 : vector<2x3x16x16xbf16> to vector<96x16xbf16>
    %cst = arith.constant dense<0.000000e+00> : vector<96x8xf32>
    %6 = tpu.matmul %5, %1, %cst {dimension_numbers = #tpu.dot_dimension_numbers<[1], [0], [0], [1], [0, 0, 1, 1], [], []>} : vector<96x16xbf16>, vector<16x8xbf16>, vector<96x8xf32> -> vector<96x8xf32>
    %7 = arith.truncf %6 : vector<96x8xf32> to vector<96x8xbf16>
    %8 = vector.shape_cast %7 : vector<96x8xbf16> to vector<2x3x16x8xbf16>
    %9 = vector.extract_strided_slice %8 {offsets = [0, 0, 0, 0], sizes = [1, 1, 16, 8], strides = [1, 1, 1, 1]} : vector<2x3x16x8xbf16> to vector<1x1x16x8xbf16>
    %10 = vector.shape_cast %9 : vector<1x1x16x8xbf16> to vector<16x8xbf16>
    %cst_7 = arith.constant dense<0.000000e+00> : vector<8x8xf32>
    %11 = tpu.matmul %0, %10, %cst_7 {dimension_numbers = #tpu.dot_dimension_numbers<[1], [0], [0], [1], [0, 0, 1, 1], [], []>} : vector<8x16xbf16>, vector<16x8xbf16>, vector<8x8xf32> -> vector<8x8xf32>
    %c0_8 = arith.constant 0 : index
    %12 = memref.load %arg1[%c0_8] : memref<3xf32, #tpu.memory_space<smem>>
    %13 = vector.broadcast %12 : f32 to vector<8x8xf32>
    %14 = arith.mulf %11, %13 : vector<8x8xf32>
    %c0_9 = arith.constant 0 : index
    %15 = memref.load %arg2[%c0_9] : memref<3xf32, #tpu.memory_space<smem>>
    %16 = vector.broadcast %15 : f32 to vector<8x8xf32>
    %17 = arith.subf %14, %16 : vector<8x8xf32>
    %c0_10 = arith.constant 0 : index
    %c0_11 = arith.constant 0 : index
    %c0_12 = arith.constant 0 : index
    %c0_13 = arith.constant 0 : index
    %18 = vector.load %arg6[%c0_10, %c0_11, %c0_12, %c0_13] : memref<2x3x8x8xf32, #tpu.memory_space<vmem>>, vector<1x1x8x8xf32>
    %19 = vector.shape_cast %18 : vector<1x1x8x8xf32> to vector<8x8xf32>
    %20 = vector.shape_cast %17 : vector<8x8xf32> to vector<1x1x8x8xf32>
    tpu.vector_store %arg6[%c0_10, %c0_11, %c0_12, %c0_13], %20 {strides = array<i32>} : memref<2x3x8x8xf32, #tpu.memory_space<vmem>>, vector<1x1x8x8xf32>,
    %21 = vector.extract_strided_slice %8 {offsets = [0, 1, 0, 0], sizes = [1, 1, 16, 8], strides = [1, 1, 1, 1]} : vector<2x3x16x8xbf16> to vector<1x1x16x8xbf16>
    %22 = vector.shape_cast %21 : vector<1x1x16x8xbf16> to vector<16x8xbf16>
    %cst_14 = arith.constant dense<0.000000e+00> : vector<8x8xf32>
    %23 = tpu.matmul %0, %22, %cst_14 {dimension_numbers = #tpu.dot_dimension_numbers<[1], [0], [0], [1], [0, 0, 1, 1], [], []>} : vector<8x16xbf16>, vector<16x8xbf16>, vector<8x8xf32> -> vector<8x8xf32>
    %c1 = arith.constant 1 : index
    %24 = memref.load %arg1[%c1] : memref<3xf32, #tpu.memory_space<smem>>
    %25 = vector.broadcast %24 : f32 to vector<8x8xf32>
    %26 = arith.mulf %23, %25 : vector<8x8xf32>
    %c1_15 = arith.constant 1 : index
    %27 = memref.load %arg2[%c1_15] : memref<3xf32, #tpu.memory_space<smem>>
    %28 = vector.broadcast %27 : f32 to vector<8x8xf32>
    %29 = arith.subf %26, %28 : vector<8x8xf32>
    %c0_16 = arith.constant 0 : index
    %c1_17 = arith.constant 1 : index
    %c0_18 = arith.constant 0 : index
    %c0_19 = arith.constant 0 : index
    %30 = vector.load %arg6[%c0_16, %c1_17, %c0_18, %c0_19] : memref<2x3x8x8xf32, #tpu.memory_space<vmem>>, vector<1x1x8x8xf32>
    %31 = vector.shape_cast %30 : vector<1x1x8x8xf32> to vector<8x8xf32>
    %32 = vector.shape_cast %29 : vector<8x8xf32> to vector<1x1x8x8xf32>
    tpu.vector_store %arg6[%c0_16, %c1_17, %c0_18, %c0_19], %32 {strides = array<i32>} : memref<2x3x8x8xf32, #tpu.memory_space<vmem>>, vector<1x1x8x8xf32>,
    %33 = vector.extract_strided_slice %8 {offsets = [0, 2, 0, 0], sizes = [1, 1, 16, 8], strides = [1, 1, 1, 1]} : vector<2x3x16x8xbf16> to vector<1x1x16x8xbf16>
    %34 = vector.shape_cast %33 : vector<1x1x16x8xbf16> to vector<16x8xbf16>
    %cst_20 = arith.constant dense<0.000000e+00> : vector<8x8xf32>
    %35 = tpu.matmul %0, %34, %cst_20 {dimension_numbers = #tpu.dot_dimension_numbers<[1], [0], [0], [1], [0, 0, 1, 1], [], []>} : vector<8x16xbf16>, vector<16x8xbf16>, vector<8x8xf32> -> vector<8x8xf32>
    %c2 = arith.constant 2 : index
    %36 = memref.load %arg1[%c2] : memref<3xf32, #tpu.memory_space<smem>>
    %37 = vector.broadcast %36 : f32 to vector<8x8xf32>
    %38 = arith.mulf %35, %37 : vector<8x8xf32>
    %c2_21 = arith.constant 2 : index
    %39 = memref.load %arg2[%c2_21] : memref<3xf32, #tpu.memory_space<smem>>
    %40 = vector.broadcast %39 : f32 to vector<8x8xf32>
    %41 = arith.subf %38, %40 : vector<8x8xf32>
    %c0_22 = arith.constant 0 : index
    %c2_23 = arith.constant 2 : index
    %c0_24 = arith.constant 0 : index
    %c0_25 = arith.constant 0 : index
    %42 = vector.load %arg6[%c0_22, %c2_23, %c0_24, %c0_25] : memref<2x3x8x8xf32, #tpu.memory_space<vmem>>, vector<1x1x8x8xf32>
    %43 = vector.shape_cast %42 : vector<1x1x8x8xf32> to vector<8x8xf32>
    %44 = vector.shape_cast %41 : vector<8x8xf32> to vector<1x1x8x8xf32>
    tpu.vector_store %arg6[%c0_22, %c2_23, %c0_24, %c0_25], %44 {strides = array<i32>} : memref<2x3x8x8xf32, #tpu.memory_space<vmem>>, vector<1x1x8x8xf32>,
    %45 = vector.extract_strided_slice %8 {offsets = [1, 0, 0, 0], sizes = [1, 1, 16, 8], strides = [1, 1, 1, 1]} : vector<2x3x16x8xbf16> to vector<1x1x16x8xbf16>
    %46 = vector.shape_cast %45 : vector<1x1x16x8xbf16> to vector<16x8xbf16>
    %cst_26 = arith.constant dense<0.000000e+00> : vector<8x8xf32>
    %47 = tpu.matmul %0, %46, %cst_26 {dimension_numbers = #tpu.dot_dimension_numbers<[1], [0], [0], [1], [0, 0, 1, 1], [], []>} : vector<8x16xbf16>, vector<16x8xbf16>, vector<8x8xf32> -> vector<8x8xf32>
    %c0_27 = arith.constant 0 : index
    %48 = memref.load %arg1[%c0_27] : memref<3xf32, #tpu.memory_space<smem>>
    %49 = vector.broadcast %48 : f32 to vector<8x8xf32>
    %50 = arith.mulf %47, %49 : vector<8x8xf32>
    %c0_28 = arith.constant 0 : index
    %51 = memref.load %arg2[%c0_28] : memref<3xf32, #tpu.memory_space<smem>>
    %52 = vector.broadcast %51 : f32 to vector<8x8xf32>
    %53 = arith.subf %50, %52 : vector<8x8xf32>
    %c1_29 = arith.constant 1 : index
    %c0_30 = arith.constant 0 : index
    %c0_31 = arith.constant 0 : index
    %c0_32 = arith.constant 0 : index
    %54 = vector.load %arg6[%c1_29, %c0_30, %c0_31, %c0_32] : memref<2x3x8x8xf32, #tpu.memory_space<vmem>>, vector<1x1x8x8xf32>
    %55 = vector.shape_cast %54 : vector<1x1x8x8xf32> to vector<8x8xf32>
    %56 = vector.shape_cast %53 : vector<8x8xf32> to vector<1x1x8x8xf32>
    tpu.vector_store %arg6[%c1_29, %c0_30, %c0_31, %c0_32], %56 {strides = array<i32>} : memref<2x3x8x8xf32, #tpu.memory_space<vmem>>, vector<1x1x8x8xf32>,
    %57 = vector.extract_strided_slice %8 {offsets = [1, 1, 0, 0], sizes = [1, 1, 16, 8], strides = [1, 1, 1, 1]} : vector<2x3x16x8xbf16> to vector<1x1x16x8xbf16>
    %58 = vector.shape_cast %57 : vector<1x1x16x8xbf16> to vector<16x8xbf16>
    %cst_33 = arith.constant dense<0.000000e+00> : vector<8x8xf32>
    %59 = tpu.matmul %0, %58, %cst_33 {dimension_numbers = #tpu.dot_dimension_numbers<[1], [0], [0], [1], [0, 0, 1, 1], [], []>} : vector<8x16xbf16>, vector<16x8xbf16>, vector<8x8xf32> -> vector<8x8xf32>
    %c1_34 = arith.constant 1 : index
    %60 = memref.load %arg1[%c1_34] : memref<3xf32, #tpu.memory_space<smem>>
    %61 = vector.broadcast %60 : f32 to vector<8x8xf32>
    %62 = arith.mulf %59, %61 : vector<8x8xf32>
    %c1_35 = arith.constant 1 : index
    %63 = memref.load %arg2[%c1_35] : memref<3xf32, #tpu.memory_space<smem>>
    %64 = vector.broadcast %63 : f32 to vector<8x8xf32>
    %65 = arith.subf %62, %64 : vector<8x8xf32>
    %c1_36 = arith.constant 1 : index
    %c1_37 = arith.constant 1 : index
    %c0_38 = arith.constant 0 : index
    %c0_39 = arith.constant 0 : index
    %66 = vector.load %arg6[%c1_36, %c1_37, %c0_38, %c0_39] : memref<2x3x8x8xf32, #tpu.memory_space<vmem>>, vector<1x1x8x8xf32>
    %67 = vector.shape_cast %66 : vector<1x1x8x8xf32> to vector<8x8xf32>
    %68 = vector.shape_cast %65 : vector<8x8xf32> to vector<1x1x8x8xf32>
    tpu.vector_store %arg6[%c1_36, %c1_37, %c0_38, %c0_39], %68 {strides = array<i32>} : memref<2x3x8x8xf32, #tpu.memory_space<vmem>>, vector<1x1x8x8xf32>,
    %69 = vector.extract_strided_slice %8 {offsets = [1, 2, 0, 0], sizes = [1, 1, 16, 8], strides = [1, 1, 1, 1]} : vector<2x3x16x8xbf16> to vector<1x1x16x8xbf16>
    %70 = vector.shape_cast %69 : vector<1x1x16x8xbf16> to vector<16x8xbf16>
    %cst_40 = arith.constant dense<0.000000e+00> : vector<8x8xf32>
    %71 = tpu.matmul %0, %70, %cst_40 {dimension_numbers = #tpu.dot_dimension_numbers<[1], [0], [0], [1], [0, 0, 1, 1], [], []>} : vector<8x16xbf16>, vector<16x8xbf16>, vector<8x8xf32> -> vector<8x8xf32>
    %c2_41 = arith.constant 2 : index
    %72 = memref.load %arg1[%c2_41] : memref<3xf32, #tpu.memory_space<smem>>
    %73 = vector.broadcast %72 : f32 to vector<8x8xf32>
    %74 = arith.mulf %71, %73 : vector<8x8xf32>
    %c2_42 = arith.constant 2 : index
    %75 = memref.load %arg2[%c2_42] : memref<3xf32, #tpu.memory_space<smem>>
    %76 = vector.broadcast %75 : f32 to vector<8x8xf32>
    %77 = arith.subf %74, %76 : vector<8x8xf32>
    %c1_43 = arith.constant 1 : index
    %c2_44 = arith.constant 2 : index
    %c0_45 = arith.constant 0 : index
    %c0_46 = arith.constant 0 : index
    %78 = vector.load %arg6[%c1_43, %c2_44, %c0_45, %c0_46] : memref<2x3x8x8xf32, #tpu.memory_space<vmem>>, vector<1x1x8x8xf32>
    %79 = vector.shape_cast %78 : vector<1x1x8x8xf32> to vector<8x8xf32>
    %80 = vector.shape_cast %77 : vector<8x8xf32> to vector<1x1x8x8xf32>
    tpu.vector_store %arg6[%c1_43, %c2_44, %c0_45, %c0_46], %80 {strides = array<i32>} : memref<2x3x8x8xf32, #tpu.memory_space<vmem>>, vector<1x1x8x8xf32>,
    return
  }
  func.func @transform_0(%arg0: i32) -> i32 {
    %c0_i32 = arith.constant 0 : i32
    %c0_i32_0 = arith.constant 0 : i32
    return %c0_i32 : i32
  }
  func.func @transform_1(%arg0: i32) -> i32 {
    %c0_i32 = arith.constant 0 : i32
    %c0_i32_0 = arith.constant 0 : i32
    return %c0_i32 : i32
  }
  func.func @transform_2(%arg0: i32) -> (i32, i32) {
    %c0_i32 = arith.constant 0 : i32
    %c0_i32_0 = arith.constant 0 : i32
    %c0_i32_1 = arith.constant 0 : i32
    return %c0_i32, %c0_i32_0 : i32, i32
  }
  func.func @transform_3(%arg0: i32) -> (i32, i32) {
    %c0_i32 = arith.constant 0 : i32
    %c0_i32_0 = arith.constant 0 : i32
    %c0_i32_1 = arith.constant 0 : i32
    return %c0_i32, %c0_i32_0 : i32, i32
  }
  func.func @transform_4(%arg0: i32) -> (i32, i32, i32, i32) {
    %c0_i32 = arith.constant 0 : i32
    %c0_i32_0 = arith.constant 0 : i32
    %c0_i32_1 = arith.constant 0 : i32
    %c0_i32_2 = arith.constant 0 : i32
    return %arg0, %c0_i32, %c0_i32_0, %c0_i32_1 : i32, i32, i32, i32
  }
  func.func @transform_5(%arg0: i32) -> (i32, i32, i32, i32) {
    %c0_i32 = arith.constant 0 : i32
    %c0_i32_0 = arith.constant 0 : i32
    %c0_i32_1 = arith.constant 0 : i32
    %c0_i32_2 = arith.constant 0 : i32
    return %arg0, %c0_i32, %c0_i32_0, %c0_i32_1 : i32, i32, i32, i32
  }
}

</mosaic_0001>

<llo_original>
// kernel: tpu_custom_call.1
$region0: #{tpu_custom_call.1}
  #allocation0 [shape = 'u32[]', space=smem, size = 0x4, offset = 0x4, fixed_abs, tag = 'smem constant byte address 0x4 - core index']
  #allocation1 [shape = 'u32[144,128]{1,0:T(1,128)}', space=vmem, size = 0x12000, scoped, tag = 'internal scratch']
  %s0 = inlined_call_operand.vmem [shape: f32[3], index: 0, kind: input, shape index: {}]
  %s1 = inlined_call_operand.vmem [shape: f32[3], index: 1, kind: input, shape index: {}]
  %s2 = inlined_call_operand.vmem [shape: bf16[8,16], index: 2, kind: input, shape index: {}]
  %s3 = inlined_call_operand.vmem [shape: bf16[16,8], index: 3, kind: input, shape index: {}]
  %s4 = inlined_call_operand.hbm [shape: u8[2,3,16,16], index: 4, kind: input, shape index: {}]
  %s5 = inlined_call_operand.hbm [shape: f32[2,3,8,8], index: 5, kind: output, shape index: {}]
  %s6 = sld [smem:[#allocation0]]
  $region42: #{tpu_custom_call.1} parent=0
    _
  %s8 = ssub.s32 1, %s6
  %s9 = scalar_select 0, %s8, %s6
  $region1: #{tpu_custom_call.1} parent=0
    #allocation2 [shape = 'u8[512]{0}', space=smem, size = 0x200, scoped, tag = 'input window, operand 0, single buffered']
    #allocation3 [shape = 's32[1]{0}', space=sflag, size = 0x4, scoped, tag = 'scoped memory for tpu_custom_call.1']
    #allocation4 [shape = 's32[1]{0}', space=sflag, size = 0x4, scoped, tag = 'scoped memory for tpu_custom_call.1']
    #allocation5 [shape = 's32[1]{0}', space=sflag, size = 0x4, scoped, tag = 'scoped memory for tpu_custom_call.1']
    #allocation6 [shape = 'u8[512]{0}', space=smem, size = 0x200, scoped, tag = 'input window, operand 1, single buffered']
    #allocation7 [shape = 's32[1]{0}', space=sflag, size = 0x4, scoped, tag = 'scoped memory for tpu_custom_call.1']
    #allocation8 [shape = 'u8[12288]{0}', space=vmem, size = 0x3000, scoped, tag = 'input window, operand 4, single buffered']
    #allocation9 [shape = 'u8[24576]{0}', space=vmem, size = 0x6000, scoped, tag = 'output window, operand 0, single buffered']
    %10 = vsyncpa [#allocation5], 0
    %11 = vsyncpa [#allocation7], 0
    %12 = vsyncpa [#allocation3], 0
    %13 = vsyncpa [#allocation4], 0
    // Predicated region
    $region2: #{tpu_custom_call.1} parent=1 // pred_check
      _
    $region3: #{tpu_custom_call.1} parent=1 // pred_check_branch
      %15 = sbr.rel (0) target = $region5
    $region4: #{tpu_custom_call.1} parent=1 // pred_region
      %s17 = ssub.s32 16, 16
      %18 = vsyncadd [#allocation5], %s17
      %s20 = sshll.u32 %s0, 4
      %s21 = int_to_ptr.vmem [resolvable:$true] %s20
      %23 = dma.vmem_to_smem %s21, 16, [#allocation2], [#allocation5]
    $region5: #{tpu_custom_call.1} parent=1 // pred_fallthru
      _
    // Predicated region
    $region6: #{tpu_custom_call.1} parent=1 // pred_check
      _
    $region7: #{tpu_custom_call.1} parent=1 // pred_check_branch
      %25 = sbr.rel (0) target = $region9
    $region8: #{tpu_custom_call.1} parent=1 // pred_region
      %s27 = ssub.s32 16, 16
      %28 = vsyncadd [#allocation7], %s27
      %s30 = sshll.u32 %s1, 4
      %s31 = int_to_ptr.vmem [resolvable:$true] %s30
      %33 = dma.vmem_to_smem %s31, 16, [#allocation6], [#allocation7]
    $region9: #{tpu_custom_call.1} parent=1 // pred_fallthru
      _
    // Predicated region
    $region10: #{tpu_custom_call.1} parent=1 // pred_check
      _
    $region11: #{tpu_custom_call.1} parent=1 // pred_check_branch
      %35 = sbr.rel (0) target = $region13
    $region12: #{tpu_custom_call.1} parent=1 // pred_region
      _
    $region13: #{tpu_custom_call.1} parent=1 // pred_fallthru
      _
    // Predicated region
    $region14: #{tpu_custom_call.1} parent=1 // pred_check
      _
    $region15: #{tpu_custom_call.1} parent=1 // pred_check_branch
      %37 = sbr.rel (0) target = $region17
    $region16: #{tpu_custom_call.1} parent=1 // pred_region
      _
    $region17: #{tpu_custom_call.1} parent=1 // pred_fallthru
      _
    // Predicated region
    $region18: #{tpu_custom_call.1} parent=1 // pred_check
      _
    $region19: #{tpu_custom_call.1} parent=1 // pred_check_branch
      %39 = sbr.rel (0) target = $region21
    $region20: #{tpu_custom_call.1} parent=1 // pred_region
      %s41 = ssub.s32 384, 384
      %42 = vsyncadd [#allocation3], %s41
      %s43 = sshll.u32 [#allocation8], 4
      %s44 = int_to_ptr.vmem [resolvable:$true] %s43
      %49 = dma.hbm_to_vmem [thread:$0]  %s4, 384, %s44, [#allocation3], 32, 32, 2
    $region21: #{tpu_custom_call.1} parent=1 // pred_fallthru
      _
    // Predicated region
    $region22: #{tpu_custom_call.1} parent=1 // pred_check
      _
    $region23: #{tpu_custom_call.1} parent=1 // pred_check_branch
      %51 = sbr.rel (0) target = $region25
    $region24: #{tpu_custom_call.1} parent=1 // pred_region
      %52 = dma.done [#allocation5], 16
    $region25: #{tpu_custom_call.1} parent=1 // pred_fallthru
      _
    // Predicated region
    $region26: #{tpu_custom_call.1} parent=1 // pred_check
      _
    $region27: #{tpu_custom_call.1} parent=1 // pred_check_branch
      %54 = sbr.rel (0) target = $region29
    $region28: #{tpu_custom_call.1} parent=1 // pred_region
      %55 = dma.done [#allocation7], 16
    $region29: #{tpu_custom_call.1} parent=1 // pred_fallthru
      _
    // Predicated region
    $region30: #{tpu_custom_call.1} parent=1 // pred_check
      _
    $region31: #{tpu_custom_call.1} parent=1 // pred_check_branch
      %57 = sbr.rel (0) target = $region33
    $region32: #{tpu_custom_call.1} parent=1 // pred_region
      %58 = dma.done [#allocation3], 384
    $region33: #{tpu_custom_call.1} parent=1 // pred_fallthru
      _
    %59 = sfence
    %v61 = vld [vmem:[%s2] sm:$0xf]
    %v62 = vld [vmem:[%s3] sm:$0xf]
    %v63 = vld [vmem:[%s3 + $0x4] sm:$0xf]
    %v64 = vld [vmem:[#allocation8] sm:$0x3]
    %v65 = vld [vmem:[#allocation8 + $0x2] sm:$0x3]
    %v66 = vld [vmem:[#allocation8 + $0x4] sm:$0x3]
    %v67 = vld [vmem:[#allocation8 + $0x6] sm:$0x3]
    %v68 = vld [vmem:[#allocation8 + $0x8] sm:$0x3]
    %v69 = vld [vmem:[#allocation8 + $0xa] sm:$0x3]
    %v70 = vld [vmem:[#allocation8 + $0xc] sm:$0x3]
    %v71 = vld [vmem:[#allocation8 + $0xe] sm:$0x3]
    %v72 = vld [vmem:[#allocation8 + $0x10] sm:$0x3]
    %v73 = vld [vmem:[#allocation8 + $0x12] sm:$0x3]
    %v74 = vld [vmem:[#allocation8 + $0x14] sm:$0x3]
    %v75 = vld [vmem:[#allocation8 + $0x16] sm:$0x3]
    %v76 = vunpack.c.l.u8.bf16 %v64
    %v77 = vunpack.c.l.u8.bf16 %v65
    %v78 = vunpack.c.l.u8.bf16 %v66
    %v79 = vunpack.c.l.u8.bf16 %v67
    %v80 = vunpack.c.l.u8.bf16 %v68
    %v81 = vunpack.c.l.u8.bf16 %v69
    %v82 = vunpack.c.l.u8.bf16 %v70
    %v83 = vunpack.c.l.u8.bf16 %v71
    %v84 = vunpack.c.l.u8.bf16 %v72
    %v85 = vunpack.c.l.u8.bf16 %v73
    %v86 = vunpack.c.l.u8.bf16 %v74
    %v87 = vunpack.c.l.u8.bf16 %v75
    %v100 = vunpack.c.l.b16 %v76
    %v101 = vunpack.c.l.b16 %v77
    %v102 = vunpack.c.l.b16 %v78
    %v103 = vunpack.c.l.b16 %v79
    %v104 = vunpack.c.l.b16 %v80
    %v105 = vunpack.c.l.b16 %v81
    %v106 = vunpack.c.l.b16 %v82
    %v107 = vunpack.c.l.b16 %v83
    %v108 = vunpack.c.l.b16 %v84
    %v109 = vunpack.c.l.b16 %v85
    %v110 = vunpack.c.l.b16 %v86
    %v111 = vunpack.c.l.b16 %v87
    %v112 = vpack.c.b16 %v101, %v100
    %v113 = vpack.c.b16 %v103, %v102
    %v114 = vpack.c.b16 %v105, %v104
    %v115 = vpack.c.b16 %v107, %v106
    %v116 = vpack.c.b16 %v109, %v108
    %v117 = vpack.c.b16 %v111, %v110
    %v120 = vunpack.c.l.b16 %v62
    %v121 = vunpack.c.l.b16 %v63
    %v122 = vpack.c.b16 %v121, %v120
    %vm124 = vcmask 130048
    %v126 = vsel %vm124, %v112, 0
    %v129 = vsel %vm124, %v113, 0
    %v132 = vsel %vm124, %v114, 0
    %v135 = vsel %vm124, %v115, 0
    %v138 = vsel %vm124, %v116, 0
    %v141 = vsel %vm124, %v117, 0
    %143 = vmatprep.subr.bf16.mxu0 0
    %144 = vmatpush1.bf16.msra.mxu0 0
    %145 = vmatprep.subr.bf16.mxu0 0
    %146 = vmatpush1.bf16.msra.mxu0 0
    %147 = vmatprep.subr.bf16.mxu0 0
    %148 = vmatpush1.bf16.msra.mxu0 0
    %149 = vmatprep.subr.bf16.mxu0 0
    %150 = vmatpush1.bf16.msra.mxu0 0
    %151 = vmatprep.subr.bf16.mxu0 0
    %152 = vmatpush1.bf16.msra.mxu0 0
    %153 = vmatprep.subr.bf16.mxu0 0
    %154 = vmatpush1.bf16.msra.mxu0 0
    %155 = vmatprep.subr.bf16.mxu0 0
    %156 = vmatpush1.bf16.msra.mxu0 0
    %157 = vmatprep.subr.bf16.mxu0 0
    %158 = vmatpush1.bf16.msra.mxu0 %v122
    %159 = vmatprep.subr.bf16.mxu0 0
    %160 = vmatpush2.bf16.msra.mxu0 0
    %161 = vmatprep.subr.bf16.mxu0 0
    %162 = vmatpush2.bf16.msra.mxu0 0
    %163 = vmatprep.subr.bf16.mxu0 0
    %164 = vmatpush2.bf16.msra.mxu0 0
    %165 = vmatprep.subr.bf16.mxu0 0
    %166 = vmatpush2.bf16.msra.mxu0 0
    %167 = vmatprep.subr.bf16.mxu0 0
    %168 = vmatpush2.bf16.msra.mxu0 0
    %169 = vmatprep.subr.bf16.mxu0 0
    %170 = vmatpush2.bf16.msra.mxu0 0
    %171 = vmatprep.subr.bf16.mxu0 0
    %172 = vmatpush2.bf16.msra.mxu0 0
    %173 = vmatprep.subr.bf16.mxu0 0
    %174 = vmatpush2.bf16.msra.mxu0 0
    %175 = vmatprep.mubr.bf16.mxu0 0
    %176 = vmatmul.mubr.bf16.gmra.mxu0 %v126
    %v177 = vpop.f32.mrf.mxu0
    %v178 = vadd.f32 0.0, %v177
    %v179 = vpop.f32.mrf.mxu0
    %v180 = vpop.f32.mrf.mxu0
    %v181 = vadd.f32 0.0, %v180
    %v182 = vpop.f32.mrf.mxu0
    %183 = vmatprep.mubr.bf16.mxu0 0
    %184 = vmatmul.mubr.bf16.gmra.mxu0 %v129
    %v185 = vpop.f32.mrf.mxu0
    %v186 = vadd.f32 0.0, %v185
    %v187 = vpop.f32.mrf.mxu0
    %v188 = vpop.f32.mrf.mxu0
    %v189 = vadd.f32 0.0, %v188
    %v190 = vpop.f32.mrf.mxu0
    %191 = vmatprep.mubr.bf16.mxu0 0
    %192 = vmatmul.mubr.bf16.gmra.mxu0 %v132
    %v193 = vpop.f32.mrf.mxu0
    %v194 = vadd.f32 0.0, %v193
    %v195 = vpop.f32.mrf.mxu0
    %v196 = vpop.f32.mrf.mxu0
    %v197 = vadd.f32 0.0, %v196
    %v198 = vpop.f32.mrf.mxu0
    %199 = vmatprep.mubr.bf16.mxu0 0
    %200 = vmatmul.mubr.bf16.gmra.mxu0 %v135
    %v201 = vpop.f32.mrf.mxu0
    %v202 = vadd.f32 0.0, %v201
    %v203 = vpop.f32.mrf.mxu0
    %v204 = vpop.f32.mrf.mxu0
    %v205 = vadd.f32 0.0, %v204
    %v206 = vpop.f32.mrf.mxu0
    %207 = vmatprep.mubr.bf16.mxu0 0
    %208 = vmatmul.mubr.bf16.gmra.mxu0 %v138
    %v209 = vpop.f32.mrf.mxu0
    %v210 = vadd.f32 0.0, %v209
    %v211 = vpop.f32.mrf.mxu0
    %v212 = vpop.f32.mrf.mxu0
    %v213 = vadd.f32 0.0, %v212
    %v214 = vpop.f32.mrf.mxu0
    %215 = vmatprep.mubr.bf16.mxu0 0
    %216 = vmatmul.mubr.bf16.gmra.mxu0 %v141
    %v217 = vpop.f32.mrf.mxu0
    %v218 = vadd.f32 0.0, %v217
    %v219 = vpop.f32.mrf.mxu0
    %v220 = vpop.f32.mrf.mxu0
    %v221 = vadd.f32 0.0, %v220
    %v222 = vpop.f32.mrf.mxu0
    %223 = vdwg.mxu0
    %v224 = vpack.c.bf16 %v181, %v178
    %v225 = vpack.c.bf16 %v189, %v186
    %v226 = vpack.c.bf16 %v197, %v194
    %v227 = vpack.c.bf16 %v205, %v202
    %v228 = vpack.c.bf16 %v213, %v210
    %v229 = vpack.c.bf16 %v221, %v218
    %v231 = vsel %vm124, %v61, 0
    %233 = vmatprep.subr.bf16.mxu0 0
    %234 = vmatpush1.bf16.msra.mxu0 0
    %235 = vmatprep.subr.bf16.mxu0 0
    %236 = vmatpush1.bf16.msra.mxu0 0
    %237 = vmatprep.subr.bf16.mxu0 0
    %238 = vmatpush1.bf16.msra.mxu0 0
    %239 = vmatprep.subr.bf16.mxu0 0
    %240 = vmatpush1.bf16.msra.mxu0 0
    %241 = vmatprep.subr.bf16.mxu0 0
    %242 = vmatpush1.bf16.msra.mxu0 0
    %243 = vmatprep.subr.bf16.mxu0 0
    %244 = vmatpush1.bf16.msra.mxu0 0
    %245 = vmatprep.subr.bf16.mxu0 0
    %246 = vmatpush1.bf16.msra.mxu0 0
    %247 = vmatprep.subr.bf16.mxu0 0
    %248 = vmatpush1.bf16.msra.mxu0 %v224
    %249 = vmatprep.subr.bf16.mxu0 0
    %250 = vmatpush2.bf16.msra.mxu0 0
    %251 = vmatprep.subr.bf16.mxu0 0
    %252 = vmatpush2.bf16.msra.mxu0 0
    %253 = vmatprep.subr.bf16.mxu0 0
    %254 = vmatpush2.bf16.msra.mxu0 0
    %255 = vmatprep.subr.bf16.mxu0 0
    %256 = vmatpush2.bf16.msra.mxu0 0
    %257 = vmatprep.subr.bf16.mxu0 0
    %258 = vmatpush2.bf16.msra.mxu0 0
    %259 = vmatprep.subr.bf16.mxu0 0
    %260 = vmatpush2.bf16.msra.mxu0 0
    %261 = vmatprep.subr.bf16.mxu0 0
    %262 = vmatpush2.bf16.msra.mxu0 0
    %263 = vmatprep.subr.bf16.mxu0 0
    %264 = vmatpush2.bf16.msra.mxu0 0
    %265 = vmatprep.mubr.bf16.mxu0 0
    %266 = vmatmul.mubr.bf16.gmra.mxu0 %v231
    %v267 = vpop.f32.mrf.mxu0
    %v268 = vadd.f32 0.0, %v267
    %v269 = vpop.f32.mrf.mxu0
    %v270 = vpop.f32.mrf.mxu0
    %v271 = vpop.f32.mrf.mxu0
    %272 = vdwg.mxu0
    %s273 = sld [smem:[#allocation2]]
    %v274 = vstv %s273
    %v275 = vmul.f32 %v268, %v274
    %s276 = sld [smem:[#allocation6]]
    %v277 = vstv %s276
    %v278 = vsub.f32 %v275, %v277
    %vm279 = vcmask 64512
    %280 = vst.msk [vmem:[#allocation9] sm:$0xff] %vm279, %v278
    %281 = vmatprep.subr.bf16.mxu0 0
    %282 = vmatpush1.bf16.msra.mxu0 0
    %283 = vmatprep.subr.bf16.mxu0 0
    %284 = vmatpush1.bf16.msra.mxu0 0
    %285 = vmatprep.subr.bf16.mxu0 0
    %286 = vmatpush1.bf16.msra.mxu0 0
    %287 = vmatprep.subr.bf16.mxu0 0
    %288 = vmatpush1.bf16.msra.mxu0 0
    %289 = vmatprep.subr.bf16.mxu0 0
    %290 = vmatpush1.bf16.msra.mxu0 0
    %291 = vmatprep.subr.bf16.mxu0 0
    %292 = vmatpush1.bf16.msra.mxu0 0
    %293 = vmatprep.subr.bf16.mxu0 0
    %294 = vmatpush1.bf16.msra.mxu0 0
    %295 = vmatprep.subr.bf16.mxu0 0
    %296 = vmatpush1.bf16.msra.mxu0 %v225
    %297 = vmatprep.subr.bf16.mxu0 0
    %298 = vmatpush2.bf16.msra.mxu0 0
    %299 = vmatprep.subr.bf16.mxu0 0
    %300 = vmatpush2.bf16.msra.mxu0 0
    %301 = vmatprep.subr.bf16.mxu0 0
    %302 = vmatpush2.bf16.msra.mxu0 0
    %303 = vmatprep.subr.bf16.mxu0 0
    %304 = vmatpush2.bf16.msra.mxu0 0
    %305 = vmatprep.subr.bf16.mxu0 0
    %306 = vmatpush2.bf16.msra.mxu0 0
    %307 = vmatprep.subr.bf16.mxu0 0
    %308 = vmatpush2.bf16.msra.mxu0 0
    %309 = vmatprep.subr.bf16.mxu0 0
    %310 = vmatpush2.bf16.msra.mxu0 0
    %311 = vmatprep.subr.bf16.mxu0 0
    %312 = vmatpush2.bf16.msra.mxu0 0
    %313 = vmatprep.mubr.bf16.mxu0 0
    %314 = vmatmul.mubr.bf16.gmra.mxu0 %v231
    %v315 = vpop.f32.mrf.mxu0
    %v316 = vadd.f32 0.0, %v315
    %v317 = vpop.f32.mrf.mxu0
    %v318 = vpop.f32.mrf.mxu0
    %v319 = vpop.f32.mrf.mxu0
    %320 = vdwg.mxu0
    %s321 = sld [smem:[#allocation2 + $0x1]]
    %v322 = vstv %s321
    %v323 = vmul.f32 %v316, %v322
    %s324 = sld [smem:[#allocation6 + $0x1]]
    %v325 = vstv %s324
    %v326 = vsub.f32 %v323, %v325
    %s327 = scalar_lea.vmem [#allocation9], 8
    %328 = vst.msk [vmem:[%s327] sm:$0xff] %vm279, %v326
    %329 = vmatprep.subr.bf16.mxu0 0
    %330 = vmatpush1.bf16.msra.mxu0 0
    %331 = vmatprep.subr.bf16.mxu0 0
    %332 = vmatpush1.bf16.msra.mxu0 0
    %333 = vmatprep.subr.bf16.mxu0 0
    %334 = vmatpush1.bf16.msra.mxu0 0
    %335 = vmatprep.subr.bf16.mxu0 0
    %336 = vmatpush1.bf16.msra.mxu0 0
    %337 = vmatprep.subr.bf16.mxu0 0
    %338 = vmatpush1.bf16.msra.mxu0 0
    %339 = vmatprep.subr.bf16.mxu0 0
    %340 = vmatpush1.bf16.msra.mxu0 0
    %341 = vmatprep.subr.bf16.mxu0 0
    %342 = vmatpush1.bf16.msra.mxu0 0
    %343 = vmatprep.subr.bf16.mxu0 0
    %344 = vmatpush1.bf16.msra.mxu0 %v226
    %345 = vmatprep.subr.bf16.mxu0 0
    %346 = vmatpush2.bf16.msra.mxu0 0
    %347 = vmatprep.subr.bf16.mxu0 0
    %348 = vmatpush2.bf16.msra.mxu0 0
    %349 = vmatprep.subr.bf16.mxu0 0
    %350 = vmatpush2.bf16.msra.mxu0 0
    %351 = vmatprep.subr.bf16.mxu0 0
    %352 = vmatpush2.bf16.msra.mxu0 0
    %353 = vmatprep.subr.bf16.mxu0 0
    %354 = vmatpush2.bf16.msra.mxu0 0
    %355 = vmatprep.subr.bf16.mxu0 0
    %356 = vmatpush2.bf16.msra.mxu0 0
    %357 = vmatprep.subr.bf16.mxu0 0
    %358 = vmatpush2.bf16.msra.mxu0 0
    %359 = vmatprep.subr.bf16.mxu0 0
    %360 = vmatpush2.bf16.msra.mxu0 0
    %361 = vmatprep.mubr.bf16.mxu0 0
    %362 = vmatmul.mubr.bf16.gmra.mxu0 %v231
    %v363 = vpop.f32.mrf.mxu0
    %v364 = vadd.f32 0.0, %v363
    %v365 = vpop.f32.mrf.mxu0
    %v366 = vpop.f32.mrf.mxu0
    %v367 = vpop.f32.mrf.mxu0
    %368 = vdwg.mxu0
    %s369 = sld [smem:[#allocation2 + $0x2]]
    %v370 = vstv %s369
    %v371 = vmul.f32 %v364, %v370
    %s372 = sld [smem:[#allocation6 + $0x2]]
    %v373 = vstv %s372
    %v374 = vsub.f32 %v371, %v373
    %s375 = scalar_lea.vmem [#allocation9], 16
    %376 = vst.msk [vmem:[%s375] sm:$0xff] %vm279, %v374
    %377 = vmatprep.subr.bf16.mxu0 0
    %378 = vmatpush1.bf16.msra.mxu0 0
    %379 = vmatprep.subr.bf16.mxu0 0
    %380 = vmatpush1.bf16.msra.mxu0 0
    %381 = vmatprep.subr.bf16.mxu0 0
    %382 = vmatpush1.bf16.msra.mxu0 0
    %383 = vmatprep.subr.bf16.mxu0 0
    %384 = vmatpush1.bf16.msra.mxu0 0
    %385 = vmatprep.subr.bf16.mxu0 0
    %386 = vmatpush1.bf16.msra.mxu0 0
    %387 = vmatprep.subr.bf16.mxu0 0
    %388 = vmatpush1.bf16.msra.mxu0 0
    %389 = vmatprep.subr.bf16.mxu0 0
    %390 = vmatpush1.bf16.msra.mxu0 0
    %391 = vmatprep.subr.bf16.mxu0 0
    %392 = vmatpush1.bf16.msra.mxu0 %v227
    %393 = vmatprep.subr.bf16.mxu0 0
    %394 = vmatpush2.bf16.msra.mxu0 0
    %395 = vmatprep.subr.bf16.mxu0 0
    %396 = vmatpush2.bf16.msra.mxu0 0
    %397 = vmatprep.subr.bf16.mxu0 0
    %398 = vmatpush2.bf16.msra.mxu0 0
    %399 = vmatprep.subr.bf16.mxu0 0
    %400 = vmatpush2.bf16.msra.mxu0 0
    %401 = vmatprep.subr.bf16.mxu0 0
    %402 = vmatpush2.bf16.msra.mxu0 0
    %403 = vmatprep.subr.bf16.mxu0 0
    %404 = vmatpush2.bf16.msra.mxu0 0
    %405 = vmatprep.subr.bf16.mxu0 0
    %406 = vmatpush2.bf16.msra.mxu0 0
    %407 = vmatprep.subr.bf16.mxu0 0
    %408 = vmatpush2.bf16.msra.mxu0 0
    %409 = vmatprep.mubr.bf16.mxu0 0
    %410 = vmatmul.mubr.bf16.gmra.mxu0 %v231
    %v411 = vpop.f32.mrf.mxu0
    %v412 = vadd.f32 0.0, %v411
    %v413 = vpop.f32.mrf.mxu0
    %v414 = vpop.f32.mrf.mxu0
    %v415 = vpop.f32.mrf.mxu0
    %416 = vdwg.mxu0
    %s417 = sld [smem:[#allocation2]]
    %v418 = vstv %s417
    %v419 = vmul.f32 %v412, %v418
    %s420 = sld [smem:[#allocation6]]
    %v421 = vstv %s420
    %v422 = vsub.f32 %v419, %v421
    %s423 = scalar_lea.vmem [#allocation9], 24
    %424 = vst.msk [vmem:[%s423] sm:$0xff] %vm279, %v422
    %425 = vmatprep.subr.bf16.mxu0 0
    %426 = vmatpush1.bf16.msra.mxu0 0
    %427 = vmatprep.subr.bf16.mxu0 0
    %428 = vmatpush1.bf16.msra.mxu0 0
    %429 = vmatprep.subr.bf16.mxu0 0
    %430 = vmatpush1.bf16.msra.mxu0 0
    %431 = vmatprep.subr.bf16.mxu0 0
    %432 = vmatpush1.bf16.msra.mxu0 0
    %433 = vmatprep.subr.bf16.mxu0 0
    %434 = vmatpush1.bf16.msra.mxu0 0
    %435 = vmatprep.subr.bf16.mxu0 0
    %436 = vmatpush1.bf16.msra.mxu0 0
    %437 = vmatprep.subr.bf16.mxu0 0
    %438 = vmatpush1.bf16.msra.mxu0 0
    %439 = vmatprep.subr.bf16.mxu0 0
    %440 = vmatpush1.bf16.msra.mxu0 %v228
    %441 = vmatprep.subr.bf16.mxu0 0
    %442 = vmatpush2.bf16.msra.mxu0 0
    %443 = vmatprep.subr.bf16.mxu0 0
    %444 = vmatpush2.bf16.msra.mxu0 0
    %445 = vmatprep.subr.bf16.mxu0 0
    %446 = vmatpush2.bf16.msra.mxu0 0
    %447 = vmatprep.subr.bf16.mxu0 0
    %448 = vmatpush2.bf16.msra.mxu0 0
    %449 = vmatprep.subr.bf16.mxu0 0
    %450 = vmatpush2.bf16.msra.mxu0 0
    %451 = vmatprep.subr.bf16.mxu0 0
    %452 = vmatpush2.bf16.msra.mxu0 0
    %453 = vmatprep.subr.bf16.mxu0 0
    %454 = vmatpush2.bf16.msra.mxu0 0
    %455 = vmatprep.subr.bf16.mxu0 0
    %456 = vmatpush2.bf16.msra.mxu0 0
    %457 = vmatprep.mubr.bf16.mxu0 0
    %458 = vmatmul.mubr.bf16.gmra.mxu0 %v231
    %v459 = vpop.f32.mrf.mxu0
    %v460 = vadd.f32 0.0, %v459
    %v461 = vpop.f32.mrf.mxu0
    %v462 = vpop.f32.mrf.mxu0
    %v463 = vpop.f32.mrf.mxu0
    %464 = vdwg.mxu0
    %s465 = sld [smem:[#allocation2 + $0x1]]
    %v466 = vstv %s465
    %v467 = vmul.f32 %v460, %v466
    %s468 = sld [smem:[#allocation6 + $0x1]]
    %v469 = vstv %s468
    %v470 = vsub.f32 %v467, %v469
    %s471 = scalar_lea.vmem [#allocation9], 32
    %472 = vst.msk [vmem:[%s471] sm:$0xff] %vm279, %v470
    %473 = vmatprep.subr.bf16.mxu0 0
    %474 = vmatpush1.bf16.msra.mxu0 0
    %475 = vmatprep.subr.bf16.mxu0 0
    %476 = vmatpush1.bf16.msra.mxu0 0
    %477 = vmatprep.subr.bf16.mxu0 0
    %478 = vmatpush1.bf16.msra.mxu0 0
    %479 = vmatprep.subr.bf16.mxu0 0
    %480 = vmatpush1.bf16.msra.mxu0 0
    %481 = vmatprep.subr.bf16.mxu0 0
    %482 = vmatpush1.bf16.msra.mxu0 0
    %483 = vmatprep.subr.bf16.mxu0 0
    %484 = vmatpush1.bf16.msra.mxu0 0
    %485 = vmatprep.subr.bf16.mxu0 0
    %486 = vmatpush1.bf16.msra.mxu0 0
    %487 = vmatprep.subr.bf16.mxu0 0
    %488 = vmatpush1.bf16.msra.mxu0 %v229
    %489 = vmatprep.subr.bf16.mxu0 0
    %490 = vmatpush2.bf16.msra.mxu0 0
    %491 = vmatprep.subr.bf16.mxu0 0
    %492 = vmatpush2.bf16.msra.mxu0 0
    %493 = vmatprep.subr.bf16.mxu0 0
    %494 = vmatpush2.bf16.msra.mxu0 0
    %495 = vmatprep.subr.bf16.mxu0 0
    %496 = vmatpush2.bf16.msra.mxu0 0
    %497 = vmatprep.subr.bf16.mxu0 0
    %498 = vmatpush2.bf16.msra.mxu0 0
    %499 = vmatprep.subr.bf16.mxu0 0
    %500 = vmatpush2.bf16.msra.mxu0 0
    %501 = vmatprep.subr.bf16.mxu0 0
    %502 = vmatpush2.bf16.msra.mxu0 0
    %503 = vmatprep.subr.bf16.mxu0 0
    %504 = vmatpush2.bf16.msra.mxu0 0
    %505 = vmatprep.mubr.bf16.mxu0 0
    %506 = vmatmul.mubr.bf16.gmra.mxu0 %v231
    %v507 = vpop.f32.mrf.mxu0
    %v508 = vadd.f32 0.0, %v507
    %v509 = vpop.f32.mrf.mxu0
    %v510 = vpop.f32.mrf.mxu0
    %v511 = vpop.f32.mrf.mxu0
    %512 = vdwg.mxu0
    %s513 = sld [smem:[#allocation2 + $0x2]]
    %v514 = vstv %s513
    %v515 = vmul.f32 %v508, %v514
    %s516 = sld [smem:[#allocation6 + $0x2]]
    %v517 = vstv %s516
    %v518 = vsub.f32 %v515, %v517
    %s519 = scalar_lea.vmem [#allocation9], 40
    %520 = vst.msk [vmem:[%s519] sm:$0xff] %vm279, %v518
    // Predicated region
    $region34: #{tpu_custom_call.1} parent=1 // pred_check
      _
    $region35: #{tpu_custom_call.1} parent=1 // pred_check_branch
      %522 = sbr.rel (0) target = $region37
    $region36: #{tpu_custom_call.1} parent=1 // pred_region
      %s524 = ssub.s32 768, 768
      %525 = vsyncadd [#allocation4], %s524
      %s526 = sshll.u32 [#allocation9], 4
      %s527 = int_to_ptr.vmem [resolvable:$true] %s526
      %532 = dma.vmem_to_hbm [thread:$0]  %s527, 768, %s5, [#allocation4], 128, 128, 8
    $region37: #{tpu_custom_call.1} parent=1 // pred_fallthru
      _
    // Predicated region
    $region38: #{tpu_custom_call.1} parent=1 // pred_check
      _
    $region39: #{tpu_custom_call.1} parent=1 // pred_check_branch
      %534 = sbr.rel (0) target = $region41
    $region40: #{tpu_custom_call.1} parent=1 // pred_region
      %535 = dma.done [#allocation4], 768
    $region41: #{tpu_custom_call.1} parent=1 // pred_fallthru
      _
    %536 = vsyncpa [#allocation3], 1
    %537 = vsyncpa [#allocation4], 1
    %538 = vsyncpa [#allocation5], 1
    %539 = vsyncpa [#allocation7], 1

</llo_original>
